<compile_context>
chip_gen: v7x
topology: tpu7x:2x2x1
jax: 0.10.0
libtpu: 0.0.40
codegen_flags: <defaults>
</compile_context>

<pallas_src>
import functools

import jax
import jax.numpy as jnp
from jax import lax
from jax.experimental import pallas as pl
from jax.experimental.pallas import tpu as pltpu


def _round_up(x, m):
    return (x + m - 1) // m * m


# --------------------------------------------------------------------------
# Pallas kernel 1: tiled matmul + bias + optional ReLU (used for every conv)
#   A, B are bf16 (MXU-native), accumulate / bias / ReLU in f32.
# --------------------------------------------------------------------------
def _matmul_bias_act_kernel(a_ref, b_ref, bias_ref, o_ref, *, relu):
    acc = jnp.dot(a_ref[...], b_ref[...], preferred_element_type=jnp.float32)
    acc = acc + bias_ref[...]
    if relu:
        acc = jnp.maximum(acc, 0.0)
    o_ref[...] = acc


def matmul_bias_relu(a, b, bias, relu=True):
    """a: [M, K], b: [K, N], bias: [N] -> relu(a @ b + bias), float32."""
    M, K = a.shape
    K2, N = b.shape
    assert K == K2
    # Adaptive M tile: no 128-row zero padding for the tiny late-layer matmuls,
    # up to 256 rows to fill the 256-wide MXU on v6e/v7x (still fine on v5e).
    tm = min(_round_up(M, 16), 256)
    Mp = _round_up(M, tm)
    Kp = _round_up(K, 128)
    Np = _round_up(N, 128)
    a_p = jnp.pad(a, ((0, Mp - M), (0, Kp - K))).astype(jnp.bfloat16)
    b_p = jnp.pad(b, ((0, Kp - K), (0, Np - N))).astype(jnp.bfloat16)
    bias_p = jnp.pad(bias, (0, Np - N)).reshape(1, Np).astype(jnp.float32)

    out = pl.pallas_call(
        functools.partial(_matmul_bias_act_kernel, relu=relu),
        out_shape=jax.ShapeDtypeStruct((Mp, Np), jnp.float32),
        grid=(Mp // tm,),
        in_specs=[
            pl.BlockSpec((tm, Kp), lambda i: (i, 0)),
            pl.BlockSpec((Kp, Np), lambda i: (0, 0)),   # resident across M tiles
            pl.BlockSpec((1, Np), lambda i: (0, 0)),
        ],
        out_specs=pl.BlockSpec((tm, Np), lambda i: (i, 0)),
        compiler_params=pltpu.CompilerParams(
            dimension_semantics=("parallel",)),
    )(a_p, b_p, bias_p)
    return out[:M, :N]


# --------------------------------------------------------------------------
# Pallas kernel 2: per-tap LPIPS distance with fused spatial reduction
#   grid = (image, row_tile); rows = pixels, lanes = channels.
#   d(img) = sum_pixels sum_c w_c * (f0/||f0|| - f1/||f1||)^2   (mean applied outside)
# --------------------------------------------------------------------------
def _lpips_dist_kernel(f0_ref, f1_ref, w_ref, o_ref, acc_ref):
    r = pl.program_id(1)

    @pl.when(r == 0)
    def _():
        acc_ref[0, 0] = jnp.float32(0.0)

    eps = 1e-10
    f0 = f0_ref[0]                                       # (tr, Cp)
    f1 = f1_ref[0]
    # lpips.normalize_tensor via rsqrt (EUP slot); zero-padded rows/channels contribute 0.
    inv0 = lax.rsqrt(jnp.sum(f0 * f0, axis=-1, keepdims=True) + eps)
    inv1 = lax.rsqrt(jnp.sum(f1 * f1, axis=-1, keepdims=True) + eps)
    d = (f0 * inv0 - f1 * inv1) ** 2
    acc_ref[0, 0] += jnp.sum(d * w_ref[...])

    @pl.when(r == pl.num_programs(1) - 1)
    def _():
        # lane-dense output block (broadcast scalar); only [.,0,0] is consumed.
        o_ref[...] = jnp.full(o_ref.shape, acc_ref[0, 0], dtype=o_ref.dtype)


def lpips_layer_dist(f0, f1, w, max_rows=512):
    """f0, f1: [N, H, W, C] feature taps; w: [C] 1x1-conv weights -> per-image mean [N]."""
    N, H, W, C = f0.shape
    HW = H * W
    Cp = _round_up(C, 128)
    tr = min(_round_up(HW, 8), max_rows)
    HWp = _round_up(HW, tr)

    def prep(f):
        f = f.reshape(N, HW, C)
        return jnp.pad(f, ((0, 0), (0, HWp - HW), (0, Cp - C)))

    f0p = prep(f0)
    f1p = prep(f1)
    wp = jnp.pad(w, (0, Cp - C)).reshape(1, Cp)

    out = pl.pallas_call(
        _lpips_dist_kernel,
        out_shape=jax.ShapeDtypeStruct((N, 8, 128), jnp.float32),
        grid=(N, HWp // tr),
        in_specs=[
            pl.BlockSpec((1, tr, Cp), lambda n, r: (n, r, 0)),
            pl.BlockSpec((1, tr, Cp), lambda n, r: (n, r, 0)),
            pl.BlockSpec((1, Cp), lambda n, r: (0, 0)),
        ],
        out_specs=pl.BlockSpec((1, 8, 128), lambda n, r: (n, 0, 0)),
        scratch_shapes=[pltpu.SMEM((1, 1), jnp.float32)],
        compiler_params=pltpu.CompilerParams(
            dimension_semantics=("parallel", "arbitrary")),
    )(f0p, f1p, wp)
    # zero-padded rows contribute nothing; divide by the true pixel count.
    return out[:, 0, 0] / float(HW)


# --------------------------------------------------------------------------
# Plain-JAX glue: im2col conv wrapper and 3x3/s2 maxpool
# --------------------------------------------------------------------------
def conv2d(x, w_oihw, b, stride, pad, relu=True):
    """x: [N,H,W,C] NHWC; w_oihw: [OC,IC,KH,KW] (PyTorch layout); b: [OC]."""
    OC, IC, KH, KW = w_oihw.shape
    N, H, W, C = x.shape
    assert C == IC
    # bf16 activations: halves HBM traffic of the im2col buffer and feeds the MXU natively.
    xp = jnp.pad(x.astype(jnp.bfloat16), ((0, 0), (pad, pad), (pad, pad), (0, 0)))
    Hp, Wp = H + 2 * pad, W + 2 * pad
    oh = (Hp - KH) // stride + 1
    ow = (Wp - KW) // stride + 1
    # TODO(synk): im2col is still materialized in HBM; folding the (kh,kw) loop into a
    # matmul reduction grid axis would avoid it, but the stride-4 window sampling of
    # conv1 is not expressible with BlockSpec index maps alone.
    cols = []
    for i in range(KH):
        for j in range(KW):
            cols.append(
                xp[:, i:i + stride * (oh - 1) + 1:stride,
                      j:j + stride * (ow - 1) + 1:stride, :])
    a = jnp.concatenate(cols, axis=-1).reshape(N * oh * ow, KH * KW * IC)
    # match the (kh, kw, ic) flattening order used above
    wmat = jnp.transpose(w_oihw, (2, 3, 1, 0)).reshape(KH * KW * IC, OC)
    y = matmul_bias_relu(a, wmat, b, relu=relu)
    return y.reshape(N, oh, ow, OC)


def maxpool3x3s2(x):
    # TODO(synk): maxpool kept as lax.reduce_window (plain JAX), not a Pallas kernel.
    return lax.reduce_window(x, -jnp.inf, lax.max,
                             window_dimensions=(1, 3, 3, 1),
                             window_strides=(1, 2, 2, 1),
                             padding="VALID")


# --------------------------------------------------------------------------
# LPIPS(net='alex') module with synthetic deterministic weights
# --------------------------------------------------------------------------
class LPIPSAlexPallas:
    # AlexNet conv config: (OC, IC, KH, KW, stride, pad)
    _CFG = [
        (64, 3, 11, 11, 4, 2),
        (192, 64, 5, 5, 1, 2),
        (384, 192, 3, 3, 1, 1),
        (256, 384, 3, 3, 1, 1),
        (256, 256, 3, 3, 1, 1),
    ]
    _CHNS = [64, 192, 384, 256, 256]

    def __init__(self, key):
        n = len(self._CFG)
        keys = jax.random.split(key, 3 * n)
        self.conv_w, self.conv_b, self.lin_w = [], [], []
        for idx, (oc, ic, kh, kw, _, _) in enumerate(self._CFG):
            fan_in = ic * kh * kw
            w = jax.random.normal(keys[2 * idx], (oc, ic, kh, kw),
                                  jnp.float32) / jnp.sqrt(float(fan_in))
            b = jax.random.normal(keys[2 * idx + 1], (oc,), jnp.float32) * 0.1
            self.conv_w.append(w)
            self.conv_b.append(b)
        for idx, c in enumerate(self._CHNS):
            lw = jnp.abs(jax.random.normal(keys[2 * n + idx], (c,),
                                           jnp.float32)) * 0.1
            self.lin_w.append(lw)
        # lpips ScalingLayer constants
        self.shift = jnp.array([-0.030, -0.088, -0.188], jnp.float32)
        self.scale = jnp.array([0.458, 0.448, 0.450], jnp.float32)

    def _features(self, x):  # x: NHWC, already scaled
        feats = []
        h = conv2d(x, self.conv_w[0], self.conv_b[0], stride=4, pad=2)  # relu1
        feats.append(h)
        h = maxpool3x3s2(h)
        h = conv2d(h, self.conv_w[1], self.conv_b[1], stride=1, pad=2)  # relu2
        feats.append(h)
        h = maxpool3x3s2(h)
        h = conv2d(h, self.conv_w[2], self.conv_b[2], stride=1, pad=1)  # relu3
        feats.append(h)
        h = conv2d(h, self.conv_w[3], self.conv_b[3], stride=1, pad=1)  # relu4
        feats.append(h)
        h = conv2d(h, self.conv_w[4], self.conv_b[4], stride=1, pad=1)  # relu5
        feats.append(h)
        return feats

    def __call__(self, inp, tgt):
        """inp, tgt: [N, 3, H, W] float32 in [0,1]  ->  [N, 1, 1, 1]."""
        N = inp.shape[0]
        # Run both images through the trunk in one pass: concat along batch.
        x = jnp.concatenate([inp, tgt], axis=0)          # [2N, 3, H, W]
        x = jnp.transpose(x, (0, 2, 3, 1))               # NCHW -> NHWC
        # (*2-1) followed by the ScalingLayer, as a single fused affine pass.
        # TODO(synk): could be folded into conv1's weights, but that changes the
        # zero-padding semantics at the border unless the pad value is adjusted.
        a = 2.0 / self.scale
        c = (-1.0 - self.shift) / self.scale
        x = x * a + c

        feats = self._features(x)                        # each: [2N, h, w, c]

        total = jnp.zeros((N,), jnp.float32)
        for f, w in zip(feats, self.lin_w):
            total = total + lpips_layer_dist(f[:N], f[N:], w)
        return total.reshape(N, 1, 1, 1)


if __name__ == "__main__":
    key = jax.random.PRNGKey(0)
    k_in, k_tg, k_w = jax.random.split(key, 3)
    # AlexNet's stride/pool stack needs >= ~64x64 spatial; keep batch small.
    N, C, H, W = 2, 3, 64, 64
    inp = jax.random.uniform(k_in, (N, C, H, W), jnp.float32)
    tgt = jax.random.uniform(k_tg, (N, C, H, W), jnp.float32)

    model = LPIPSAlexPallas(k_w)
    out = model(inp, tgt)
    out = jax.block_until_ready(out)
    assert out.shape == (N, 1, 1, 1)
    assert bool(jnp.all(jnp.isfinite(out)))
    print("KERNEL_OK")
</pallas_src>

<mosaic_0001>
module attributes {stable_mosaic.version = 11 : i64} {
  func.func @_matmul_bias_act_kernel(%arg0: i32, %arg1: memref<256x384xbf16, #tpu.memory_space<vmem>>, %arg2: memref<384x128xbf16, #tpu.memory_space<vmem>>, %arg3: memref<1x128xf32, #tpu.memory_space<vmem>>, %arg4: memref<256x128xf32, #tpu.memory_space<vmem>>) attributes {dimension_semantics = [#tpu.dimension_semantics<parallel>], iteration_bounds = array<i64: 4>, scalar_prefetch = 0 : i64, scratch_operands = 0 : i64, tpu.core_type = #tpu.core_type<tc>, window_params = [{transform_indices = @transform_0, window_bounds = array<i64: 256, 384>}, {pipeline_mode = #tpu.pipeline_mode<synchronous>, transform_indices = @transform_1, window_bounds = array<i64: 384, 128>}, {pipeline_mode = #tpu.pipeline_mode<synchronous>, transform_indices = @transform_2, window_bounds = array<i64: 1, 128>}, {transform_indices = @transform_3, window_bounds = array<i64: 256, 128>}]} {
    %c0 = arith.constant 0 : index
    %c0_0 = arith.constant 0 : index
    %0 = vector.load %arg1[%c0, %c0_0] : memref<256x384xbf16, #tpu.memory_space<vmem>>, vector<256x384xbf16>
    %c0_1 = arith.constant 0 : index
    %c0_2 = arith.constant 0 : index
    %1 = vector.load %arg2[%c0_1, %c0_2] : memref<384x128xbf16, #tpu.memory_space<vmem>>, vector<384x128xbf16>
    %cst = arith.constant dense<0.000000e+00> : vector<256x128xf32>
    %2 = tpu.matmul %0, %1, %cst {dimension_numbers = #tpu.dot_dimension_numbers<[1], [0], [0], [1], [0, 0, 1, 1], [], []>} : vector<256x384xbf16>, vector<384x128xbf16>, vector<256x128xf32> -> vector<256x128xf32>
    %c0_3 = arith.constant 0 : index
    %c0_4 = arith.constant 0 : index
    %3 = vector.load %arg3[%c0_3, %c0_4] : memref<1x128xf32, #tpu.memory_space<vmem>>, vector<1x128xf32>
    %4 = vector.broadcast %3 : vector<1x128xf32> to vector<256x128xf32>
    %5 = arith.addf %2, %4 : vector<256x128xf32>
    %cst_5 = arith.constant 0.000000e+00 : f32
    %6 = vector.broadcast %cst_5 : f32 to vector<256x128xf32>
    %7 = arith.maximumf %5, %6 : vector<256x128xf32>
    %c0_6 = arith.constant 0 : index
    %c0_7 = arith.constant 0 : index
    %8 = vector.load %arg4[%c0_6, %c0_7] : memref<256x128xf32, #tpu.memory_space<vmem>>, vector<256x128xf32>
    tpu.vector_store %arg4[%c0_6, %c0_7], %7 {strides = array<i32>} : memref<256x128xf32, #tpu.memory_space<vmem>>, vector<256x128xf32>,
    return
  }
  func.func @transform_0(%arg0: i32) -> (i32, i32) {
    %c0_i32 = arith.constant 0 : i32
    %c0_i32_0 = arith.constant 0 : i32
    return %arg0, %c0_i32 : i32, i32
  }
  func.func @transform_1(%arg0: i32) -> (i32, i32) {
    %c0_i32 = arith.constant 0 : i32
    %c0_i32_0 = arith.constant 0 : i32
    %c0_i32_1 = arith.constant 0 : i32
    return %c0_i32, %c0_i32_0 : i32, i32
  }
  func.func @transform_2(%arg0: i32) -> (i32, i32) {
    %c0_i32 = arith.constant 0 : i32
    %c0_i32_0 = arith.constant 0 : i32
    %c0_i32_1 = arith.constant 0 : i32
    return %c0_i32, %c0_i32_0 : i32, i32
  }
  func.func @transform_3(%arg0: i32) -> (i32, i32) {
    %c0_i32 = arith.constant 0 : i32
    %c0_i32_0 = arith.constant 0 : i32
    return %arg0, %c0_i32 : i32, i32
  }
}

</mosaic_0001>

<llo_original>
// kernel: tpu_custom_call.1
$region0: #{tpu_custom_call.1}
  #allocation0 [shape = 'u32[]', space=smem, size = 0x4, offset = 0x4, fixed_abs, tag = 'smem constant byte address 0x4 - core index']
  #allocation1 [shape = 'u32[144,128]{1,0:T(1,128)}', space=vmem, size = 0x12000, scoped, tag = 'internal scratch']
  %s0 = inlined_call_operand.hbm [shape: bf16[1024,384], index: 0, kind: input, shape index: {}]
  %s1 = inlined_call_operand.hbm [shape: bf16[384,128], index: 1, kind: input, shape index: {}]
  %s2 = inlined_call_operand.vmem [shape: f32[1,128], index: 2, kind: input, shape index: {}]
  %s3 = inlined_call_operand.hbm [shape: f32[1024,128], index: 3, kind: output, shape index: {}]
  %s4 = sld [smem:[#allocation0]]
  $region53: #{tpu_custom_call.1} parent=0
    _
  %s6 = ssub.s32 1, %s4
  %s7 = scalar_select 0, %s6, %s4
  $region1: #{tpu_custom_call.1} parent=0
    #allocation2 [shape = 'u8[393216]{0}', space=vmem, size = 0x60000, scoped, tag = 'input window, operand 0']
    #allocation3 [shape = 's32[2]{0}', space=sflag, size = 0x8, scoped, tag = 'scoped memory for tpu_custom_call.1']
    #allocation4 [shape = 's32[2]{0}', space=sflag, size = 0x8, scoped, tag = 'scoped memory for tpu_custom_call.1']
    #allocation5 [shape = 'u8[98304]{0}', space=vmem, size = 0x18000, scoped, tag = 'input window, operand 1, single buffered']
    #allocation6 [shape = 's32[1]{0}', space=sflag, size = 0x4, scoped, tag = 'scoped memory for tpu_custom_call.1']
    #allocation7 [shape = 'u8[262144]{0}', space=vmem, size = 0x40000, scoped, tag = 'output window, operand 0']
    %8 = vsyncpa [#allocation3], 0
    %s9 = scalar_lea.sflag [#allocation3], 1
    %10 = vsyncpa %s9, 0
    %11 = vsyncpa [#allocation6], 0
    %12 = vsyncpa [#allocation4], 0
    %s13 = scalar_lea.sflag [#allocation4], 1
    %14 = vsyncpa %s13, 0
    loop: start=0, step=1, limit=6
    $region2: #{tpu_custom_call.1} parent=1 // loop_pre_header
      _
    $region3: #{tpu_custom_call.1} parent=1 // loop_header
      %s16 = sphi 0, %s20
      %p17 = scmp.ge.s32.totalorder %s16, 6
      %s26 = sphi 0, %s28
      %s29 = sphi 0, %s26
      %s30 = sphi 0, %s29
      %s46 = sphi 0, %s30
      %s50 = sphi 0, %s50
      %s52 = sphi 0, %s50
      %s53 = sphi 0, %s52
      %s67 = sphi 0, %s53
      %s71 = sphi 0, %s71
      %s73 = sphi 0, %s71
      %s74 = sphi 0, %s73
      %s88 = sphi 0, %s74
      %s94 = sphi 0, %s96
      %s97 = sphi 0, %s94
      %s98 = sphi 0, %s97
      %s114 = sphi 0, %s98
    $region4: #{tpu_custom_call.1} parent=1 // loop_header_branch
      %19 = sbr.rel (%p17) target = $region8
    $region5: #{tpu_custom_call.1} parent=1 // loop_body
      %s21 = ssub.s32 %s16, 1
      %s22 = ssub.s32 %s16, 2
      %s23 = sadd.s32 %s16, 1
      %s24 = ssub.s32 %s16, %s23
      %p25 = scmp.eq.s32.totalorder %s24, 0
      %s27 = sadd.s32 %s26, 1
      %s28 = scalar_select %p25, %s26, %s27
      %p31 = pneg %p25
      %p32 = scmp.eq.s32.totalorder %s16, 3
      %p33 = por %p31, %p32
      %p34 = scmp.ne.s32.totalorder %s26, %s29
      %p35 = scmp.eq.s32.totalorder %s16, 0
      %p36 = por %p34, %p35
      %p37 = scmp.ne.s32.totalorder %s26, %s29
      %p38 = scmp.eq.s32.totalorder %s21, 3
      %p39 = por %p37, %p38
      %p40 = scmp.ne.s32.totalorder %s29, %s30
      %p41 = scmp.eq.s32.totalorder %s21, 0
      %p42 = por %p40, %p41
      %p43 = scmp.ne.s32.totalorder %s29, %s30
      %p44 = scmp.eq.s32.totalorder %s22, 3
      %p45 = por %p43, %p44
      %p47 = scmp.ne.s32.totalorder %s30, %s46
      %p48 = scmp.eq.s32.totalorder %s22, 0
      %p49 = por %p47, %p48
      %s51 = sadd.s32 %s50, 1
      %p54 = scmp.eq.s32.totalorder %s16, 3
      %p55 = scmp.ne.s32.totalorder %s50, %s52
      %p56 = scmp.eq.s32.totalorder %s16, 0
      %p57 = por %p55, %p56
      %p58 = scmp.ne.s32.totalorder %s50, %s52
      %p59 = scmp.eq.s32.totalorder %s21, 3
      %p60 = por %p58, %p59
      %p61 = scmp.ne.s32.totalorder %s52, %s53
      %p62 = scmp.eq.s32.totalorder %s21, 0
      %p63 = por %p61, %p62
      %p64 = scmp.ne.s32.totalorder %s52, %s53
      %p65 = scmp.eq.s32.totalorder %s22, 3
      %p66 = por %p64, %p65
      %p68 = scmp.ne.s32.totalorder %s53, %s67
      %p69 = scmp.eq.s32.totalorder %s22, 0
      %p70 = por %p68, %p69
      %s72 = sadd.s32 %s71, 1
      %p75 = scmp.eq.s32.totalorder %s16, 3
      %p76 = scmp.ne.s32.totalorder %s71, %s73
      %p77 = scmp.eq.s32.totalorder %s16, 0
      %p78 = por %p76, %p77
      %p79 = scmp.ne.s32.totalorder %s71, %s73
      %p80 = scmp.eq.s32.totalorder %s21, 3
      %p81 = por %p79, %p80
      %p82 = scmp.ne.s32.totalorder %s73, %s74
      %p83 = scmp.eq.s32.totalorder %s21, 0
      %p84 = por %p82, %p83
      %p85 = scmp.ne.s32.totalorder %s73, %s74
      %p86 = scmp.eq.s32.totalorder %s22, 3
      %p87 = por %p85, %p86
      %p89 = scmp.ne.s32.totalorder %s74, %s88
      %p90 = scmp.eq.s32.totalorder %s22, 0
      %p91 = por %p89, %p90
      %s92 = ssub.s32 %s16, %s23
      %p93 = scmp.eq.s32.totalorder %s92, 0
      %s95 = sadd.s32 %s94, 1
      %s96 = scalar_select %p93, %s94, %s95
      %p99 = pneg %p93
      %p100 = scmp.eq.s32.totalorder %s16, 3
      %p101 = por %p99, %p100
      %p102 = scmp.ne.s32.totalorder %s94, %s97
      %p103 = scmp.eq.s32.totalorder %s16, 0
      %p104 = por %p102, %p103
      %p105 = scmp.ne.s32.totalorder %s94, %s97
      %p106 = scmp.eq.s32.totalorder %s21, 3
      %p107 = por %p105, %p106
      %p108 = scmp.ne.s32.totalorder %s97, %s98
      %p109 = scmp.eq.s32.totalorder %s21, 0
      %p110 = por %p108, %p109
      %p111 = scmp.ne.s32.totalorder %s97, %s98
      %p112 = scmp.eq.s32.totalorder %s22, 3
      %p113 = por %p111, %p112
      %p115 = scmp.ne.s32.totalorder %s98, %s114
      %p116 = scmp.eq.s32.totalorder %s22, 0
      %p117 = por %p115, %p116
      %p118 = scmp.le.s32.totalorder 1, %s16
      %p119 = scmp.lt.s32.totalorder %s16, 5
      %p120 = pnand %p118, %p119
      %p121 = pneg %p120
      // Predicated region
      $region9: #{tpu_custom_call.1} parent=5 // pred_check
        _
      $region10: #{tpu_custom_call.1} parent=5 // pred_check_branch
        %123 = sbr.rel (%p120) target = $region12
      $region11: #{tpu_custom_call.1} parent=5 // pred_region
        %s124 = ssub.s32 %s16, 1
        // Predicated region
        $region13: #{tpu_custom_call.1} parent=11 // pred_check
          %p125 = pneg %p63
        $region14: #{tpu_custom_call.1} parent=11 // pred_check_branch
          %127 = sbr.rel (%p125) target = $region16
        $region15: #{tpu_custom_call.1} parent=11 // pred_region
          %s129 = ssub.s32 3072, 3072
          %130 = vsyncadd [#allocation6], %s129
          %s131 = sshll.u32 [#allocation5], 4
          %s132 = int_to_ptr.vmem [resolvable:$true] %s131
          %137 = dma.hbm_to_vmem [thread:$0]  %s1, 3072, %s132, [#allocation6], 64, 64, 4
        $region16: #{tpu_custom_call.1} parent=11 // pred_fallthru
          _
        // Predicated region
        $region17: #{tpu_custom_call.1} parent=11 // pred_check
          %p138 = pneg %p84
        $region18: #{tpu_custom_call.1} parent=11 // pred_check_branch
          %140 = sbr.rel (%p138) target = $region20
        $region19: #{tpu_custom_call.1} parent=11 // pred_region
          _
        $region20: #{tpu_custom_call.1} parent=11 // pred_fallthru
          _
      $region12: #{tpu_custom_call.1} parent=5 // pred_fallthru
        _
      %p141 = scmp.lt.s32.totalorder %s16, 4
      // Predicated region
      $region21: #{tpu_custom_call.1} parent=5 // pred_check
        %p142 = pneg %p141
      $region22: #{tpu_custom_call.1} parent=5 // pred_check_branch
        %144 = sbr.rel (%p142) target = $region24
      $region23: #{tpu_custom_call.1} parent=5 // pred_region
        // Predicated region
        $region25: #{tpu_custom_call.1} parent=23 // pred_check
          %p145 = pneg %p36
        $region26: #{tpu_custom_call.1} parent=23 // pred_check_branch
          %147 = sbr.rel (%p145) target = $region28
        $region27: #{tpu_custom_call.1} parent=23 // pred_region
          %s148 = sand.u32 %s26, 1
          %s149 = scalar_lea.sflag [#allocation3], %s148
          %s150 = sand.u32 %s26, 1
          %s151 = smul.addr %s150, 384
          %s152 = scalar_lea.vmem [#allocation2], %s151
          %s153 = smul.u32 32, %s16
          %s155 = ssub.s32 6144, 6144
          %156 = vsyncadd %s149, %s155
          %s157 = smul.addr %s153, 3
          %s158 = smul.addr %s157, 64
          %s159 = scalar_lea.hbm %s0, %s158
          %s160 = sshll.u32 %s152, 4
          %s161 = int_to_ptr.vmem [resolvable:$true] %s160
          %166 = dma.hbm_to_vmem [thread:$0]  %s159, 6144, %s161, %s149, 192, 192, 12
        $region28: #{tpu_custom_call.1} parent=23 // pred_fallthru
          _
      $region24: #{tpu_custom_call.1} parent=5 // pred_fallthru
        _
      %p167 = scmp.le.s32.totalorder 1, %s16
      %p168 = scmp.lt.s32.totalorder %s16, 5
      %p169 = pnand %p167, %p168
      %p170 = pneg %p169
      // Predicated region
      $region29: #{tpu_custom_call.1} parent=5 // pred_check
        _
      $region30: #{tpu_custom_call.1} parent=5 // pred_check_branch
        %172 = sbr.rel (%p169) target = $region32
      $region31: #{tpu_custom_call.1} parent=5 // pred_region
        %s173 = ssub.s32 %s16, 1
        %s174 = sand.u32 %s29, 1
        %s175 = scalar_lea.sflag [#allocation3], %s174
        %s176 = sand.u32 %s29, 1
        %s177 = smul.addr %s176, 384
        %s178 = scalar_lea.vmem [#allocation2], %s177
        // Predicated region
        $region33: #{tpu_custom_call.1} parent=31 // pred_check
          %p179 = pneg %p42
        $region34: #{tpu_custom_call.1} parent=31 // pred_check_branch
          %181 = sbr.rel (%p179) target = $region36
        $region35: #{tpu_custom_call.1} parent=31 // pred_region
          %182 = dma.done %s175, 6144
        $region36: #{tpu_custom_call.1} parent=31 // pred_fallthru
          _
        // Predicated region
        $region37: #{tpu_custom_call.1} parent=31 // pred_check
          %p183 = pneg %p63
        $region38: #{tpu_custom_call.1} parent=31 // pred_check_branch
          %185 = sbr.rel (%p183) target = $region40
        $region39: #{tpu_custom_call.1} parent=31 // pred_region
          %186 = dma.done [#allocation6], 3072
        $region40: #{tpu_custom_call.1} parent=31 // pred_fallthru
          _
        %s187 = sand.u32 %s29, 1
        %s188 = scalar_lea.sflag [#allocation3], %s187
        %s189 = sand.u32 %s29, 1
        %s190 = smul.addr %s189, 384
        %s191 = scalar_lea.vmem [#allocation2], %s190
        %p192 = pneg %p42
        %p193 = pneg %p39
        %p194 = pneg %p63
        %p195 = pneg %p60
        %p196 = pneg %p84
        %p197 = pneg %p81
        %p198 = pneg %p110
        %p199 = pneg %p107
        %s200 = sand.u32 %s97, 1
        %s201 = scalar_lea.sflag [#allocation4], %s200
        %s202 = sand.u32 %s97, 1
        %s203 = smul.addr %s202, 256
        %s204 = scalar_lea.vmem [#allocation7], %s203
        %s205 = smul.u32 32, %s21
        %s206 = smul.u32 32, %s21
        %v208 = vld [vmem:[%s178] sm:$0xff]
        %v209 = vld [vmem:[%s178 + $0x8] sm:$0xf]
        %v210 = vld [vmem:[%s178 + $0xc] sm:$0xff]
        %v211 = vld [vmem:[%s178 + $0x14] sm:$0xf]
        %v212 = vld [vmem:[%s178 + $0x18] sm:$0xff]
        %v213 = vld [vmem:[%s178 + $0x20] sm:$0xf]
        %v214 = vld [vmem:[%s178 + $0x24] sm:$0xff]
        %v215 = vld [vmem:[%s178 + $0x2c] sm:$0xf]
        %v216 = vld [vmem:[%s178 + $0x30] sm:$0xff]
        %v217 = vld [vmem:[%s178 + $0x38] sm:$0xf]
        %v218 = vld [vmem:[%s178 + $0x3c] sm:$0xff]
        %v219 = vld [vmem:[%s178 + $0x44] sm:$0xf]
        %v220 = vld [vmem:[%s178 + $0x48] sm:$0xff]
        %v221 = vld [vmem:[%s178 + $0x50] sm:$0xf]
        %v222 = vld [vmem:[%s178 + $0x54] sm:$0xff]
        %v223 = vld [vmem:[%s178 + $0x5c] sm:$0xf]
        %v224 = vld [vmem:[%s178 + $0x60] sm:$0xff]
        %v225 = vld [vmem:[%s178 + $0x68] sm:$0xf]
        %v226 = vld [vmem:[%s178 + $0x6c] sm:$0xff]
        %v227 = vld [vmem:[%s178 + $0x74] sm:$0xf]
        %v228 = vld [vmem:[%s178 + $0x78] sm:$0xff]
        %v229 = vld [vmem:[%s178 + $0x80] sm:$0xf]
        %v230 = vld [vmem:[%s178 + $0x84] sm:$0xff]
        %v231 = vld [vmem:[%s178 + $0x8c] sm:$0xf]
        %v232 = vld [vmem:[%s178 + $0x90] sm:$0xff]
        %v233 = vld [vmem:[%s178 + $0x98] sm:$0xf]
        %v234 = vld [vmem:[%s178 + $0x9c] sm:$0xff]
        %v235 = vld [vmem:[%s178 + $0xa4] sm:$0xf]
        %v236 = vld [vmem:[%s178 + $0xa8] sm:$0xff]
        %v237 = vld [vmem:[%s178 + $0xb0] sm:$0xf]
        %v238 = vld [vmem:[%s178 + $0xb4] sm:$0xff]
        %v239 = vld [vmem:[%s178 + $0xbc] sm:$0xf]
        %v240 = vld [vmem:[%s178 + $0xc0] sm:$0xff]
        %v241 = vld [vmem:[%s178 + $0xc8] sm:$0xf]
        %v242 = vld [vmem:[%s178 + $0xcc] sm:$0xff]
        %v243 = vld [vmem:[%s178 + $0xd4] sm:$0xf]
        %v244 = vld [vmem:[%s178 + $0xd8] sm:$0xff]
        %v245 = vld [vmem:[%s178 + $0xe0] sm:$0xf]
        %v246 = vld [vmem:[%s178 + $0xe4] sm:$0xff]
        %v247 = vld [vmem:[%s178 + $0xec] sm:$0xf]
        %v248 = vld [vmem:[%s178 + $0xf0] sm:$0xff]
        %v249 = vld [vmem:[%s178 + $0xf8] sm:$0xf]
        %v250 = vld [vmem:[%s178 + $0xfc] sm:$0xff]
        %v251 = vld [vmem:[%s178 + $0x104] sm:$0xf]
        %v252 = vld [vmem:[%s178 + $0x108] sm:$0xff]
        %v253 = vld [vmem:[%s178 + $0x110] sm:$0xf]
        %v254 = vld [vmem:[%s178 + $0x114] sm:$0xff]
        %v255 = vld [vmem:[%s178 + $0x11c] sm:$0xf]
        %v256 = vld [vmem:[%s178 + $0x120] sm:$0xff]
        %v257 = vld [vmem:[%s178 + $0x128] sm:$0xf]
        %v258 = vld [vmem:[%s178 + $0x12c] sm:$0xff]
        %v259 = vld [vmem:[%s178 + $0x134] sm:$0xf]
        %v260 = vld [vmem:[%s178 + $0x138] sm:$0xff]
        %v261 = vld [vmem:[%s178 + $0x140] sm:$0xf]
        %v262 = vld [vmem:[%s178 + $0x144] sm:$0xff]
        %v263 = vld [vmem:[%s178 + $0x14c] sm:$0xf]
        %v264 = vld [vmem:[%s178 + $0x150] sm:$0xff]
        %v265 = vld [vmem:[%s178 + $0x158] sm:$0xf]
        %v266 = vld [vmem:[%s178 + $0x15c] sm:$0xff]
        %v267 = vld [vmem:[%s178 + $0x164] sm:$0xf]
        %v268 = vld [vmem:[%s178 + $0x168] sm:$0xff]
        %v269 = vld [vmem:[%s178 + $0x170] sm:$0xf]
        %v270 = vld [vmem:[%s178 + $0x174] sm:$0xff]
        %v271 = vld [vmem:[%s178 + $0x17c] sm:$0xf]
        %v272 = vld [vmem:[#allocation5] sm:$0xf]
        %v273 = vld [vmem:[#allocation5 + $0x4] sm:$0xf]
        %v274 = vld [vmem:[#allocation5 + $0x8] sm:$0xf]
        %v275 = vld [vmem:[#allocation5 + $0xc] sm:$0xf]
        %v276 = vld [vmem:[#allocation5 + $0x10] sm:$0xf]
        %v277 = vld [vmem:[#allocation5 + $0x14] sm:$0xf]
        %v278 = vld [vmem:[#allocation5 + $0x18] sm:$0xf]
        %v279 = vld [vmem:[#allocation5 + $0x1c] sm:$0xf]
        %v280 = vld [vmem:[#allocation5 + $0x20] sm:$0xf]
        %v281 = vld [vmem:[#allocation5 + $0x24] sm:$0xf]
        %v282 = vld [vmem:[#allocation5 + $0x28] sm:$0xf]
        %v283 = vld [vmem:[#allocation5 + $0x2c] sm:$0xf]
        %v284 = vld [vmem:[#allocation5 + $0x30] sm:$0xf]
        %v285 = vld [vmem:[#allocation5 + $0x34] sm:$0xf]
        %v286 = vld [vmem:[#allocation5 + $0x38] sm:$0xf]
        %v287 = vld [vmem:[#allocation5 + $0x3c] sm:$0xf]
        %v288 = vld [vmem:[#allocation5 + $0x40] sm:$0xf]
        %v289 = vld [vmem:[#allocation5 + $0x44] sm:$0xf]
        %v290 = vld [vmem:[#allocation5 + $0x48] sm:$0xf]
        %v291 = vld [vmem:[#allocation5 + $0x4c] sm:$0xf]
        %v292 = vld [vmem:[#allocation5 + $0x50] sm:$0xf]
        %v293 = vld [vmem:[#allocation5 + $0x54] sm:$0xf]
        %v294 = vld [vmem:[#allocation5 + $0x58] sm:$0xf]
        %v295 = vld [vmem:[#allocation5 + $0x5c] sm:$0xf]
        %v296 = vld [vmem:[#allocation5 + $0x60] sm:$0xf]
        %v297 = vld [vmem:[#allocation5 + $0x64] sm:$0xf]
        %v298 = vld [vmem:[#allocation5 + $0x68] sm:$0xf]
        %v299 = vld [vmem:[#allocation5 + $0x6c] sm:$0xf]
        %v300 = vld [vmem:[#allocation5 + $0x70] sm:$0xf]
        %v301 = vld [vmem:[#allocation5 + $0x74] sm:$0xf]
        %v302 = vld [vmem:[#allocation5 + $0x78] sm:$0xf]
        %v303 = vld [vmem:[#allocation5 + $0x7c] sm:$0xf]
        %v304 = vld [vmem:[#allocation5 + $0x80] sm:$0xf]
        %v305 = vld [vmem:[#allocation5 + $0x84] sm:$0xf]
        %v306 = vld [vmem:[#allocation5 + $0x88] sm:$0xf]
        %v307 = vld [vmem:[#allocation5 + $0x8c] sm:$0xf]
        %v308 = vld [vmem:[#allocation5 + $0x90] sm:$0xf]
        %v309 = vld [vmem:[#allocation5 + $0x94] sm:$0xf]
        %v310 = vld [vmem:[#allocation5 + $0x98] sm:$0xf]
        %v311 = vld [vmem:[#allocation5 + $0x9c] sm:$0xf]
        %v312 = vld [vmem:[#allocation5 + $0xa0] sm:$0xf]
        %v313 = vld [vmem:[#allocation5 + $0xa4] sm:$0xf]
        %v314 = vld [vmem:[#allocation5 + $0xa8] sm:$0xf]
        %v315 = vld [vmem:[#allocation5 + $0xac] sm:$0xf]
        %v316 = vld [vmem:[#allocation5 + $0xb0] sm:$0xf]
        %v317 = vld [vmem:[#allocation5 + $0xb4] sm:$0xf]
        %v318 = vld [vmem:[#allocation5 + $0xb8] sm:$0xf]
        %v319 = vld [vmem:[#allocation5 + $0xbc] sm:$0xf]
        %v320 = vld [vmem:[%s2] sm:$0x1]
        %v322 = vlaneseq
        %v323 = vshrl.u32 %v322, 7
        %v324 = vsub.s32 0, %v323
        %v325 = vrot.slane %v320, %v324
        %v391 = vunpack.c.l.b16 %v208
        %v392 = vunpack.c.h.b16 %v208
        %v393 = vunpack.c.l.b16 %v209
        %v394 = vunpack.c.l.b16 %v210
        %v395 = vunpack.c.h.b16 %v210
        %v396 = vunpack.c.l.b16 %v211
        %v397 = vunpack.c.l.b16 %v212
        %v398 = vunpack.c.h.b16 %v212
        %v399 = vunpack.c.l.b16 %v213
        %v400 = vunpack.c.l.b16 %v214
        %v401 = vunpack.c.h.b16 %v214
        %v402 = vunpack.c.l.b16 %v215
        %v403 = vunpack.c.l.b16 %v216
        %v404 = vunpack.c.h.b16 %v216
        %v405 = vunpack.c.l.b16 %v217
        %v406 = vunpack.c.l.b16 %v218
        %v407 = vunpack.c.h.b16 %v218
        %v408 = vunpack.c.l.b16 %v219
        %v409 = vunpack.c.l.b16 %v220
        %v410 = vunpack.c.h.b16 %v220
        %v411 = vunpack.c.l.b16 %v221
        %v412 = vunpack.c.l.b16 %v222
        %v413 = vunpack.c.h.b16 %v222
        %v414 = vunpack.c.l.b16 %v223
        %v415 = vunpack.c.l.b16 %v224
        %v416 = vunpack.c.h.b16 %v224
        %v417 = vunpack.c.l.b16 %v225
        %v418 = vunpack.c.l.b16 %v226
        %v419 = vunpack.c.h.b16 %v226
        %v420 = vunpack.c.l.b16 %v227
        %v421 = vunpack.c.l.b16 %v228
        %v422 = vunpack.c.h.b16 %v228
        %v423 = vunpack.c.l.b16 %v229
        %v424 = vunpack.c.l.b16 %v230
        %v425 = vunpack.c.h.b16 %v230
        %v426 = vunpack.c.l.b16 %v231
        %v427 = vunpack.c.l.b16 %v232
        %v428 = vunpack.c.h.b16 %v232
        %v429 = vunpack.c.l.b16 %v233
        %v430 = vunpack.c.l.b16 %v234
        %v431 = vunpack.c.h.b16 %v234
        %v432 = vunpack.c.l.b16 %v235
        %v433 = vunpack.c.l.b16 %v236
        %v434 = vunpack.c.h.b16 %v236
        %v435 = vunpack.c.l.b16 %v237
        %v436 = vunpack.c.l.b16 %v238
        %v437 = vunpack.c.h.b16 %v238
        %v438 = vunpack.c.l.b16 %v239
        %v439 = vunpack.c.l.b16 %v240
        %v440 = vunpack.c.h.b16 %v240
        %v441 = vunpack.c.l.b16 %v241
        %v442 = vunpack.c.l.b16 %v242
        %v443 = vunpack.c.h.b16 %v242
        %v444 = vunpack.c.l.b16 %v243
        %v445 = vunpack.c.l.b16 %v244
        %v446 = vunpack.c.h.b16 %v244
        %v447 = vunpack.c.l.b16 %v245
        %v448 = vunpack.c.l.b16 %v246
        %v449 = vunpack.c.h.b16 %v246
        %v450 = vunpack.c.l.b16 %v247
        %v451 = vunpack.c.l.b16 %v248
        %v452 = vunpack.c.h.b16 %v248
        %v453 = vunpack.c.l.b16 %v249
        %v454 = vunpack.c.l.b16 %v250
        %v455 = vunpack.c.h.b16 %v250
        %v456 = vunpack.c.l.b16 %v251
        %v457 = vunpack.c.l.b16 %v252
        %v458 = vunpack.c.h.b16 %v252
        %v459 = vunpack.c.l.b16 %v253
        %v460 = vunpack.c.l.b16 %v254
        %v461 = vunpack.c.h.b16 %v254
        %v462 = vunpack.c.l.b16 %v255
        %v463 = vunpack.c.l.b16 %v256
        %v464 = vunpack.c.h.b16 %v256
        %v465 = vunpack.c.l.b16 %v257
        %v466 = vunpack.c.l.b16 %v258
        %v467 = vunpack.c.h.b16 %v258
        %v468 = vunpack.c.l.b16 %v259
        %v469 = vunpack.c.l.b16 %v260
        %v470 = vunpack.c.h.b16 %v260
        %v471 = vunpack.c.l.b16 %v261
        %v472 = vunpack.c.l.b16 %v262
        %v473 = vunpack.c.h.b16 %v262
        %v474 = vunpack.c.l.b16 %v263
        %v475 = vunpack.c.l.b16 %v264
        %v476 = vunpack.c.h.b16 %v264
        %v477 = vunpack.c.l.b16 %v265
        %v478 = vunpack.c.l.b16 %v266
        %v479 = vunpack.c.h.b16 %v266
        %v480 = vunpack.c.l.b16 %v267
        %v481 = vunpack.c.l.b16 %v268
        %v482 = vunpack.c.h.b16 %v268
        %v483 = vunpack.c.l.b16 %v269
        %v484 = vunpack.c.l.b16 %v270
        %v485 = vunpack.c.h.b16 %v270
        %v486 = vunpack.c.l.b16 %v271
        %v487 = vpack.c.b16 %v394, %v391
        %v488 = vpack.c.b16 %v395, %v392
        %v489 = vpack.c.b16 %v396, %v393
        %v490 = vpack.c.b16 %v400, %v397
        %v491 = vpack.c.b16 %v401, %v398
        %v492 = vpack.c.b16 %v402, %v399
        %v493 = vpack.c.b16 %v406, %v403
        %v494 = vpack.c.b16 %v407, %v404
        %v495 = vpack.c.b16 %v408, %v405
        %v496 = vpack.c.b16 %v412, %v409
        %v497 = vpack.c.b16 %v413, %v410
        %v498 = vpack.c.b16 %v414, %v411
        %v499 = vpack.c.b16 %v418, %v415
        %v500 = vpack.c.b16 %v419, %v416
        %v501 = vpack.c.b16 %v420, %v417
        %v502 = vpack.c.b16 %v424, %v421
        %v503 = vpack.c.b16 %v425, %v422
        %v504 = vpack.c.b16 %v426, %v423
        %v505 = vpack.c.b16 %v430, %v427
        %v506 = vpack.c.b16 %v431, %v428
        %v507 = vpack.c.b16 %v432, %v429
        %v508 = vpack.c.b16 %v436, %v433
        %v509 = vpack.c.b16 %v437, %v434
        %v510 = vpack.c.b16 %v438, %v435
        %v511 = vpack.c.b16 %v442, %v439
        %v512 = vpack.c.b16 %v443, %v440
        %v513 = vpack.c.b16 %v444, %v441
        %v514 = vpack.c.b16 %v448, %v445
        %v515 = vpack.c.b16 %v449, %v446
        %v516 = vpack.c.b16 %v450, %v447
        %v517 = vpack.c.b16 %v454, %v451
        %v518 = vpack.c.b16 %v455, %v452
        %v519 = vpack.c.b16 %v456, %v453
        %v520 = vpack.c.b16 %v460, %v457
        %v521 = vpack.c.b16 %v461, %v458
        %v522 = vpack.c.b16 %v462, %v459
        %v523 = vpack.c.b16 %v466, %v463
        %v524 = vpack.c.b16 %v467, %v464
        %v525 = vpack.c.b16 %v468, %v465
        %v526 = vpack.c.b16 %v472, %v469
        %v527 = vpack.c.b16 %v473, %v470
        %v528 = vpack.c.b16 %v474, %v471
        %v529 = vpack.c.b16 %v478, %v475
        %v530 = vpack.c.b16 %v479, %v476
        %v531 = vpack.c.b16 %v480, %v477
        %v532 = vpack.c.b16 %v484, %v481
        %v533 = vpack.c.b16 %v485, %v482
        %v534 = vpack.c.b16 %v486, %v483
        %v631 = vunpack.c.l.b16 %v272
        %v632 = vunpack.c.l.b16 %v273
        %v633 = vunpack.c.l.b16 %v274
        %v634 = vunpack.c.l.b16 %v275
        %v635 = vunpack.c.l.b16 %v276
        %v636 = vunpack.c.l.b16 %v277
        %v637 = vunpack.c.l.b16 %v278
        %v638 = vunpack.c.l.b16 %v279
        %v639 = vunpack.c.l.b16 %v280
        %v640 = vunpack.c.l.b16 %v281
        %v641 = vunpack.c.l.b16 %v282
        %v642 = vunpack.c.l.b16 %v283
        %v643 = vunpack.c.l.b16 %v284
        %v644 = vunpack.c.l.b16 %v285
        %v645 = vunpack.c.l.b16 %v286
        %v646 = vunpack.c.l.b16 %v287
        %v647 = vunpack.c.l.b16 %v288
        %v648 = vunpack.c.l.b16 %v289
        %v649 = vunpack.c.l.b16 %v290
        %v650 = vunpack.c.l.b16 %v291
        %v651 = vunpack.c.l.b16 %v292
        %v652 = vunpack.c.l.b16 %v293
        %v653 = vunpack.c.l.b16 %v294
        %v654 = vunpack.c.l.b16 %v295
        %v655 = vunpack.c.l.b16 %v296
        %v656 = vunpack.c.l.b16 %v297
        %v657 = vunpack.c.l.b16 %v298
        %v658 = vunpack.c.l.b16 %v299
        %v659 = vunpack.c.l.b16 %v300
        %v660 = vunpack.c.l.b16 %v301
        %v661 = vunpack.c.l.b16 %v302
        %v662 = vunpack.c.l.b16 %v303
        %v663 = vunpack.c.l.b16 %v304
        %v664 = vunpack.c.l.b16 %v305
        %v665 = vunpack.c.l.b16 %v306
        %v666 = vunpack.c.l.b16 %v307
        %v667 = vunpack.c.l.b16 %v308
        %v668 = vunpack.c.l.b16 %v309
        %v669 = vunpack.c.l.b16 %v310
        %v670 = vunpack.c.l.b16 %v311
        %v671 = vunpack.c.l.b16 %v312
        %v672 = vunpack.c.l.b16 %v313
        %v673 = vunpack.c.l.b16 %v314
        %v674 = vunpack.c.l.b16 %v315
        %v675 = vunpack.c.l.b16 %v316
        %v676 = vunpack.c.l.b16 %v317
        %v677 = vunpack.c.l.b16 %v318
        %v678 = vunpack.c.l.b16 %v319
        %v679 = vpack.c.b16 %v632, %v631
        %v680 = vpack.c.b16 %v634, %v633
        %v681 = vpack.c.b16 %v636, %v635
        %v682 = vpack.c.b16 %v638, %v637
        %v683 = vpack.c.b16 %v640, %v639
        %v684 = vpack.c.b16 %v642, %v641
        %v685 = vpack.c.b16 %v644, %v643
        %v686 = vpack.c.b16 %v646, %v645
        %v687 = vpack.c.b16 %v648, %v647
        %v688 = vpack.c.b16 %v650, %v649
        %v689 = vpack.c.b16 %v652, %v651
        %v690 = vpack.c.b16 %v654, %v653
        %v691 = vpack.c.b16 %v656, %v655
        %v692 = vpack.c.b16 %v658, %v657
        %v693 = vpack.c.b16 %v660, %v659
        %v694 = vpack.c.b16 %v662, %v661
        %v695 = vpack.c.b16 %v664, %v663
        %v696 = vpack.c.b16 %v666, %v665
        %v697 = vpack.c.b16 %v668, %v667
        %v698 = vpack.c.b16 %v670, %v669
        %v699 = vpack.c.b16 %v672, %v671
        %v700 = vpack.c.b16 %v674, %v673
        %v701 = vpack.c.b16 %v676, %v675
        %v702 = vpack.c.b16 %v678, %v677
        %727 = vmatprep.subr.bf16.mxu0 0
        %728 = vmatpush1.bf16.msra.mxu0 %v679
        %729 = vmatprep.subr.bf16.mxu0 0
        %730 = vmatpush1.bf16.msra.mxu0 %v680
        %731 = vmatprep.subr.bf16.mxu0 0
        %732 = vmatpush1.bf16.msra.mxu0 %v681
        %733 = vmatprep.subr.bf16.mxu0 0
        %734 = vmatpush1.bf16.msra.mxu0 %v682
        %735 = vmatprep.subr.bf16.mxu0 0
        %736 = vmatpush1.bf16.msra.mxu0 %v683
        %737 = vmatprep.subr.bf16.mxu0 0
        %738 = vmatpush1.bf16.msra.mxu0 %v684
        %739 = vmatprep.subr.bf16.mxu0 0
        %740 = vmatpush1.bf16.msra.mxu0 %v685
        %741 = vmatprep.subr.bf16.mxu0 0
        %742 = vmatpush1.bf16.msra.mxu0 %v686
        %743 = vmatprep.subr.bf16.mxu0 0
        %744 = vmatpush1.bf16.msra.mxu0 %v687
        %745 = vmatprep.subr.bf16.mxu0 0
        %746 = vmatpush1.bf16.msra.mxu0 %v688
        %747 = vmatprep.subr.bf16.mxu0 0
        %748 = vmatpush1.bf16.msra.mxu0 %v689
        %749 = vmatprep.subr.bf16.mxu0 0
        %750 = vmatpush1.bf16.msra.mxu0 %v690
        %751 = vmatprep.subr.bf16.mxu0 0
        %752 = vmatpush1.bf16.msra.mxu0 %v691
        %753 = vmatprep.subr.bf16.mxu0 0
        %754 = vmatpush1.bf16.msra.mxu0 %v692
        %755 = vmatprep.subr.bf16.mxu0 0
        %756 = vmatpush1.bf16.msra.mxu0 %v693
        %757 = vmatprep.subr.bf16.mxu0 0
        %758 = vmatpush1.bf16.msra.mxu0 %v694
        %759 = vmatprep.mubr.bf16.mxu0 %v488
        %760 = vmatmul.mubr.bf16.gmra.mrb[0].mxu0 %v487
        %v761 = vpop.f32.mrb[0].mxu0
        %v762 = vadd.f32 %v325, %v761
        %v763 = vpop.f32.mrb[0].mxu0
        %v764 = vpop.f32.mrb[0].mxu0
        %v765 = vadd.f32 %v325, %v764
        %v766 = vpop.f32.mrb[0].mxu0
        %767 = vmatprep.mubr.bf16.mxu0 %v491
        %768 = vmatmul.mubr.bf16.gmra.mrb[0].mxu0 %v490
        %v769 = vpop.f32.mrb[0].mxu0
        %v770 = vadd.f32 %v325, %v769
        %v771 = vpop.f32.mrb[0].mxu0
        %v772 = vpop.f32.mrb[0].mxu0
        %v773 = vadd.f32 %v325, %v772
        %v774 = vpop.f32.mrb[0].mxu0
        %775 = vmatprep.mubr.bf16.mxu0 %v494
        %776 = vmatmul.mubr.bf16.gmra.mrb[0].mxu0 %v493
        %v777 = vpop.f32.mrb[0].mxu0
        %v778 = vadd.f32 %v325, %v777
        %v779 = vpop.f32.mrb[0].mxu0
        %v780 = vpop.f32.mrb[0].mxu0
        %v781 = vadd.f32 %v325, %v780
        %v782 = vpop.f32.mrb[0].mxu0
        %783 = vmatprep.mubr.bf16.mxu0 %v497
        %784 = vmatmul.mubr.bf16.gmra.mrb[0].mxu0 %v496
        %v785 = vpop.f32.mrb[0].mxu0
        %v786 = vadd.f32 %v325, %v785
        %v787 = vpop.f32.mrb[0].mxu0
        %v788 = vpop.f32.mrb[0].mxu0
        %v789 = vadd.f32 %v325, %v788
        %v790 = vpop.f32.mrb[0].mxu0
        %791 = vmatprep.mubr.bf16.mxu0 %v500
        %792 = vmatmul.mubr.bf16.gmra.mrb[0].mxu0 %v499
        %v793 = vpop.f32.mrb[0].mxu0
        %v794 = vadd.f32 %v325, %v793
        %v795 = vpop.f32.mrb[0].mxu0
        %v796 = vpop.f32.mrb[0].mxu0
        %v797 = vadd.f32 %v325, %v796
        %v798 = vpop.f32.mrb[0].mxu0
        %799 = vmatprep.mubr.bf16.mxu0 %v503
        %800 = vmatmul.mubr.bf16.gmra.mrb[0].mxu0 %v502
        %v801 = vpop.f32.mrb[0].mxu0
        %v802 = vadd.f32 %v325, %v801
        %v803 = vpop.f32.mrb[0].mxu0
        %v804 = vpop.f32.mrb[0].mxu0
        %v805 = vadd.f32 %v325, %v804
        %v806 = vpop.f32.mrb[0].mxu0
        %807 = vmatprep.mubr.bf16.mxu0 %v506
        %808 = vmatmul.mubr.bf16.gmra.mrb[0].mxu0 %v505
        %v809 = vpop.f32.mrb[0].mxu0
        %v810 = vadd.f32 %v325, %v809
        %v811 = vpop.f32.mrb[0].mxu0
        %v812 = vpop.f32.mrb[0].mxu0
        %v813 = vadd.f32 %v325, %v812
        %v814 = vpop.f32.mrb[0].mxu0
        %815 = vmatprep.mubr.bf16.mxu0 %v509
        %816 = vmatmul.mubr.bf16.gmra.mrb[0].mxu0 %v508
        %v817 = vpop.f32.mrb[0].mxu0
        %v818 = vadd.f32 %v325, %v817
        %v819 = vpop.f32.mrb[0].mxu0
        %v820 = vpop.f32.mrb[0].mxu0
        %v821 = vadd.f32 %v325, %v820
        %v822 = vpop.f32.mrb[0].mxu0
        %823 = vmatprep.mubr.bf16.mxu0 %v512
        %824 = vmatmul.mubr.bf16.gmra.mrb[0].mxu0 %v511
        %v825 = vpop.f32.mrb[0].mxu0
        %v826 = vadd.f32 %v325, %v825
        %v827 = vpop.f32.mrb[0].mxu0
        %v828 = vpop.f32.mrb[0].mxu0
        %v829 = vadd.f32 %v325, %v828
        %v830 = vpop.f32.mrb[0].mxu0
        %831 = vmatprep.mubr.bf16.mxu0 %v515
        %832 = vmatmul.mubr.bf16.gmra.mrb[0].mxu0 %v514
        %v833 = vpop.f32.mrb[0].mxu0
        %v834 = vadd.f32 %v325, %v833
        %v835 = vpop.f32.mrb[0].mxu0
        %v836 = vpop.f32.mrb[0].mxu0
        %v837 = vadd.f32 %v325, %v836
        %v838 = vpop.f32.mrb[0].mxu0
        %839 = vmatprep.mubr.bf16.mxu0 %v518
        %840 = vmatmul.mubr.bf16.gmra.mrb[0].mxu0 %v517
        %v841 = vpop.f32.mrb[0].mxu0
        %v842 = vadd.f32 %v325, %v841
        %v843 = vpop.f32.mrb[0].mxu0
        %v844 = vpop.f32.mrb[0].mxu0
        %v845 = vadd.f32 %v325, %v844
        %v846 = vpop.f32.mrb[0].mxu0
        %847 = vmatprep.mubr.bf16.mxu0 %v521
        %848 = vmatmul.mubr.bf16.gmra.mrb[0].mxu0 %v520
        %v849 = vpop.f32.mrb[0].mxu0
        %v850 = vadd.f32 %v325, %v849
        %v851 = vpop.f32.mrb[0].mxu0
        %v852 = vpop.f32.mrb[0].mxu0
        %v853 = vadd.f32 %v325, %v852
        %v854 = vpop.f32.mrb[0].mxu0
        %855 = vmatprep.mubr.bf16.mxu0 %v524
        %856 = vmatmul.mubr.bf16.gmra.mrb[0].mxu0 %v523
        %v857 = vpop.f32.mrb[0].mxu0
        %v858 = vadd.f32 %v325, %v857
        %v859 = vpop.f32.mrb[0].mxu0
        %v860 = vpop.f32.mrb[0].mxu0
        %v861 = vadd.f32 %v325, %v860
        %v862 = vpop.f32.mrb[0].mxu0
        %863 = vmatprep.mubr.bf16.mxu0 %v527
        %864 = vmatmul.mubr.bf16.gmra.mrb[0].mxu0 %v526
        %v865 = vpop.f32.mrb[0].mxu0
        %v866 = vadd.f32 %v325, %v865
        %v867 = vpop.f32.mrb[0].mxu0
        %v868 = vpop.f32.mrb[0].mxu0
        %v869 = vadd.f32 %v325, %v868
        %v870 = vpop.f32.mrb[0].mxu0
        %871 = vmatprep.mubr.bf16.mxu0 %v530
        %872 = vmatmul.mubr.bf16.gmra.mrb[0].mxu0 %v529
        %v873 = vpop.f32.mrb[0].mxu0
        %v874 = vadd.f32 %v325, %v873
        %v875 = vpop.f32.mrb[0].mxu0
        %v876 = vpop.f32.mrb[0].mxu0
        %v877 = vadd.f32 %v325, %v876
        %v878 = vpop.f32.mrb[0].mxu0
        %879 = vmatprep.mubr.bf16.mxu0 %v533
        %880 = vmatmul.mubr.bf16.gmra.mrb[0].mxu0 %v532
        %v881 = vpop.f32.mrb[0].mxu0
        %v882 = vadd.f32 %v325, %v881
        %v883 = vpop.f32.mrb[0].mxu0
        %v884 = vpop.f32.mrb[0].mxu0
        %v885 = vadd.f32 %v325, %v884
        %v886 = vpop.f32.mrb[0].mxu0
        %887 = vdwg.mxu0
        %888 = vmatprep.subr.bf16.mxu0 0
        %889 = vmatpush1.bf16.msra.mxu0 %v695
        %890 = vmatprep.subr.bf16.mxu0 0
        %891 = vmatpush1.bf16.msra.mxu0 %v696
        %892 = vmatprep.subr.bf16.mxu0 0
        %893 = vmatpush1.bf16.msra.mxu0 %v697
        %894 = vmatprep.subr.bf16.mxu0 0
        %895 = vmatpush1.bf16.msra.mxu0 %v698
        %896 = vmatprep.subr.bf16.mxu0 0
        %897 = vmatpush1.bf16.msra.mxu0 %v699
        %898 = vmatprep.subr.bf16.mxu0 0
        %899 = vmatpush1.bf16.msra.mxu0 %v700
        %900 = vmatprep.subr.bf16.mxu0 0
        %901 = vmatpush1.bf16.msra.mxu0 %v701
        %902 = vmatprep.subr.bf16.mxu0 0
        %903 = vmatpush1.bf16.msra.mxu0 %v702
        %904 = vmatprep.subr.bf16.mxu0 0
        %905 = vmatpush1.bf16.msra.mxu0 0
        %906 = vmatprep.subr.bf16.mxu0 0
        %907 = vmatpush1.bf16.msra.mxu0 0
        %908 = vmatprep.subr.bf16.mxu0 0
        %909 = vmatpush1.bf16.msra.mxu0 0
        %910 = vmatprep.subr.bf16.mxu0 0
        %911 = vmatpush1.bf16.msra.mxu0 0
        %912 = vmatprep.subr.bf16.mxu0 0
        %913 = vmatpush1.bf16.msra.mxu0 0
        %914 = vmatprep.subr.bf16.mxu0 0
        %915 = vmatpush1.bf16.msra.mxu0 0
        %916 = vmatprep.subr.bf16.mxu0 0
        %917 = vmatpush1.bf16.msra.mxu0 0
        %918 = vmatprep.subr.bf16.mxu0 0
        %919 = vmatpush1.bf16.msra.mxu0 0
        %920 = vmatprep.mubr.bf16.mxu0 0
        %921 = vmatmul.mubr.bf16.gmra.mrb[0].mxu0 %v489
        %v922 = vpop.f32.mrb[0].mxu0
        %v923 = vadd.f32 %v762, %v922
        %v924 = vpop.f32.mrb[0].mxu0
        %v925 = vpop.f32.mrb[0].mxu0
        %v926 = vadd.f32 %v765, %v925
        %v927 = vpop.f32.mrb[0].mxu0
        %928 = vmatprep.mubr.bf16.mxu0 0
        %929 = vmatmul.mubr.bf16.gmra.mrb[0].mxu0 %v492
        %v930 = vpop.f32.mrb[0].mxu0
        %v931 = vadd.f32 %v770, %v930
        %v932 = vpop.f32.mrb[0].mxu0
        %v933 = vpop.f32.mrb[0].mxu0
        %v934 = vadd.f32 %v773, %v933
        %v935 = vpop.f32.mrb[0].mxu0
        %936 = vmatprep.mubr.bf16.mxu0 0
        %937 = vmatmul.mubr.bf16.gmra.mrb[0].mxu0 %v495
        %v938 = vpop.f32.mrb[0].mxu0
        %v939 = vadd.f32 %v778, %v938
        %v940 = vpop.f32.mrb[0].mxu0
        %v941 = vpop.f32.mrb[0].mxu0
        %v942 = vadd.f32 %v781, %v941
        %v943 = vpop.f32.mrb[0].mxu0
        %944 = vmatprep.mubr.bf16.mxu0 0
        %945 = vmatmul.mubr.bf16.gmra.mrb[0].mxu0 %v498
        %v946 = vpop.f32.mrb[0].mxu0
        %v947 = vadd.f32 %v786, %v946
        %v948 = vpop.f32.mrb[0].mxu0
        %v949 = vpop.f32.mrb[0].mxu0
        %v950 = vadd.f32 %v789, %v949
        %v951 = vpop.f32.mrb[0].mxu0
        %952 = vmatprep.mubr.bf16.mxu0 0
        %953 = vmatmul.mubr.bf16.gmra.mrb[0].mxu0 %v501
        %v954 = vpop.f32.mrb[0].mxu0
        %v955 = vadd.f32 %v794, %v954
        %v956 = vpop.f32.mrb[0].mxu0
        %v957 = vpop.f32.mrb[0].mxu0
        %v958 = vadd.f32 %v797, %v957
        %v959 = vpop.f32.mrb[0].mxu0
        %960 = vmatprep.mubr.bf16.mxu0 0
        %961 = vmatmul.mubr.bf16.gmra.mrb[0].mxu0 %v504
        %v962 = vpop.f32.mrb[0].mxu0
        %v963 = vadd.f32 %v802, %v962
        %v964 = vpop.f32.mrb[0].mxu0
        %v965 = vpop.f32.mrb[0].mxu0
        %v966 = vadd.f32 %v805, %v965
        %v967 = vpop.f32.mrb[0].mxu0
        %968 = vmatprep.mubr.bf16.mxu0 0
        %969 = vmatmul.mubr.bf16.gmra.mrb[0].mxu0 %v507
        %v970 = vpop.f32.mrb[0].mxu0
        %v971 = vadd.f32 %v810, %v970
        %v972 = vpop.f32.mrb[0].mxu0
        %v973 = vpop.f32.mrb[0].mxu0
        %v974 = vadd.f32 %v813, %v973
        %v975 = vpop.f32.mrb[0].mxu0
        %976 = vmatprep.mubr.bf16.mxu0 0
        %977 = vmatmul.mubr.bf16.gmra.mrb[0].mxu0 %v510
        %v978 = vpop.f32.mrb[0].mxu0
        %v979 = vadd.f32 %v818, %v978
        %v980 = vpop.f32.mrb[0].mxu0
        %v981 = vpop.f32.mrb[0].mxu0
        %v982 = vadd.f32 %v821, %v981
        %v983 = vpop.f32.mrb[0].mxu0
        %984 = vmatprep.mubr.bf16.mxu0 0
        %985 = vmatmul.mubr.bf16.gmra.mrb[0].mxu0 %v513
        %v986 = vpop.f32.mrb[0].mxu0
        %v987 = vadd.f32 %v826, %v986
        %v988 = vpop.f32.mrb[0].mxu0
        %v989 = vpop.f32.mrb[0].mxu0
        %v990 = vadd.f32 %v829, %v989
        %v991 = vpop.f32.mrb[0].mxu0
        %992 = vmatprep.mubr.bf16.mxu0 0
        %993 = vmatmul.mubr.bf16.gmra.mrb[0].mxu0 %v516
        %v994 = vpop.f32.mrb[0].mxu0
        %v995 = vadd.f32 %v834, %v994
        %v996 = vpop.f32.mrb[0].mxu0
        %v997 = vpop.f32.mrb[0].mxu0
        %v998 = vadd.f32 %v837, %v997
        %v999 = vpop.f32.mrb[0].mxu0
        %1000 = vmatprep.mubr.bf16.mxu0 0
        %1001 = vmatmul.mubr.bf16.gmra.mrb[0].mxu0 %v519
        %v1002 = vpop.f32.mrb[0].mxu0
        %v1003 = vadd.f32 %v842, %v1002
        %v1004 = vpop.f32.mrb[0].mxu0
        %v1005 = vpop.f32.mrb[0].mxu0
        %v1006 = vadd.f32 %v845, %v1005
        %v1007 = vpop.f32.mrb[0].mxu0
        %1008 = vmatprep.mubr.bf16.mxu0 0
        %1009 = vmatmul.mubr.bf16.gmra.mrb[0].mxu0 %v522
        %v1010 = vpop.f32.mrb[0].mxu0
        %v1011 = vadd.f32 %v850, %v1010
        %v1012 = vpop.f32.mrb[0].mxu0
        %v1013 = vpop.f32.mrb[0].mxu0
        %v1014 = vadd.f32 %v853, %v1013
        %v1015 = vpop.f32.mrb[0].mxu0
        %1016 = vmatprep.mubr.bf16.mxu0 0
        %1017 = vmatmul.mubr.bf16.gmra.mrb[0].mxu0 %v525
        %v1018 = vpop.f32.mrb[0].mxu0
        %v1019 = vadd.f32 %v858, %v1018
        %v1020 = vpop.f32.mrb[0].mxu0
        %v1021 = vpop.f32.mrb[0].mxu0
        %v1022 = vadd.f32 %v861, %v1021
        %v1023 = vpop.f32.mrb[0].mxu0
        %1024 = vmatprep.mubr.bf16.mxu0 0
        %1025 = vmatmul.mubr.bf16.gmra.mrb[0].mxu0 %v528
        %v1026 = vpop.f32.mrb[0].mxu0
        %v1027 = vadd.f32 %v866, %v1026
        %v1028 = vpop.f32.mrb[0].mxu0
        %v1029 = vpop.f32.mrb[0].mxu0
        %v1030 = vadd.f32 %v869, %v1029
        %v1031 = vpop.f32.mrb[0].mxu0
        %1032 = vmatprep.mubr.bf16.mxu0 0
        %1033 = vmatmul.mubr.bf16.gmra.mrb[0].mxu0 %v531
        %v1034 = vpop.f32.mrb[0].mxu0
        %v1035 = vadd.f32 %v874, %v1034
        %v1036 = vpop.f32.mrb[0].mxu0
        %v1037 = vpop.f32.mrb[0].mxu0
        %v1038 = vadd.f32 %v877, %v1037
        %v1039 = vpop.f32.mrb[0].mxu0
        %1040 = vmatprep.mubr.bf16.mxu0 0
        %1041 = vmatmul.mubr.bf16.gmra.mrb[0].mxu0 %v534
        %v1042 = vpop.f32.mrb[0].mxu0
        %v1043 = vadd.f32 %v882, %v1042
        %v1044 = vpop.f32.mrb[0].mxu0
        %v1045 = vpop.f32.mrb[0].mxu0
        %v1046 = vadd.f32 %v885, %v1045
        %v1047 = vpop.f32.mrb[0].mxu0
        %1048 = vdwg.mxu0
        %v1049 = vmax.f32 %v923, 0.0
        %v1050 = vmax.f32 %v926, 0.0
        %v1051 = vmax.f32 %v931, 0.0
        %v1052 = vmax.f32 %v934, 0.0
        %v1053 = vmax.f32 %v939, 0.0
        %v1054 = vmax.f32 %v942, 0.0
        %v1055 = vmax.f32 %v947, 0.0
        %v1056 = vmax.f32 %v950, 0.0
        %v1057 = vmax.f32 %v955, 0.0
        %v1058 = vmax.f32 %v958, 0.0
        %v1059 = vmax.f32 %v963, 0.0
        %v1060 = vmax.f32 %v966, 0.0
        %v1061 = vmax.f32 %v971, 0.0
        %v1062 = vmax.f32 %v974, 0.0
        %v1063 = vmax.f32 %v979, 0.0
        %v1064 = vmax.f32 %v982, 0.0
        %v1065 = vmax.f32 %v987, 0.0
        %v1066 = vmax.f32 %v990, 0.0
        %v1067 = vmax.f32 %v995, 0.0
        %v1068 = vmax.f32 %v998, 0.0
        %v1069 = vmax.f32 %v1003, 0.0
        %v1070 = vmax.f32 %v1006, 0.0
        %v1071 = vmax.f32 %v1011, 0.0
        %v1072 = vmax.f32 %v1014, 0.0
        %v1073 = vmax.f32 %v1019, 0.0
        %v1074 = vmax.f32 %v1022, 0.0
        %v1075 = vmax.f32 %v1027, 0.0
        %v1076 = vmax.f32 %v1030, 0.0
        %v1077 = vmax.f32 %v1035, 0.0
        %v1078 = vmax.f32 %v1038, 0.0
        %v1079 = vmax.f32 %v1043, 0.0
        %v1080 = vmax.f32 %v1046, 0.0
        %1081 = vst [vmem:[%s204] sm:$0xff] %v1049
        %1082 = vst [vmem:[%s204 + $0x8] sm:$0xff] %v1050
        %1083 = vst [vmem:[%s204 + $0x10] sm:$0xff] %v1051
        %1084 = vst [vmem:[%s204 + $0x18] sm:$0xff] %v1052
        %1085 = vst [vmem:[%s204 + $0x20] sm:$0xff] %v1053
        %1086 = vst [vmem:[%s204 + $0x28] sm:$0xff] %v1054
        %1087 = vst [vmem:[%s204 + $0x30] sm:$0xff] %v1055
        %1088 = vst [vmem:[%s204 + $0x38] sm:$0xff] %v1056
        %1089 = vst [vmem:[%s204 + $0x40] sm:$0xff] %v1057
        %1090 = vst [vmem:[%s204 + $0x48] sm:$0xff] %v1058
        %1091 = vst [vmem:[%s204 + $0x50] sm:$0xff] %v1059
        %1092 = vst [vmem:[%s204 + $0x58] sm:$0xff] %v1060
        %1093 = vst [vmem:[%s204 + $0x60] sm:$0xff] %v1061
        %1094 = vst [vmem:[%s204 + $0x68] sm:$0xff] %v1062
        %1095 = vst [vmem:[%s204 + $0x70] sm:$0xff] %v1063
        %1096 = vst [vmem:[%s204 + $0x78] sm:$0xff] %v1064
        %1097 = vst [vmem:[%s204 + $0x80] sm:$0xff] %v1065
        %1098 = vst [vmem:[%s204 + $0x88] sm:$0xff] %v1066
        %1099 = vst [vmem:[%s204 + $0x90] sm:$0xff] %v1067
        %1100 = vst [vmem:[%s204 + $0x98] sm:$0xff] %v1068
        %1101 = vst [vmem:[%s204 + $0xa0] sm:$0xff] %v1069
        %1102 = vst [vmem:[%s204 + $0xa8] sm:$0xff] %v1070
        %1103 = vst [vmem:[%s204 + $0xb0] sm:$0xff] %v1071
        %1104 = vst [vmem:[%s204 + $0xb8] sm:$0xff] %v1072
        %1105 = vst [vmem:[%s204 + $0xc0] sm:$0xff] %v1073
        %1106 = vst [vmem:[%s204 + $0xc8] sm:$0xff] %v1074
        %1107 = vst [vmem:[%s204 + $0xd0] sm:$0xff] %v1075
        %1108 = vst [vmem:[%s204 + $0xd8] sm:$0xff] %v1076
        %1109 = vst [vmem:[%s204 + $0xe0] sm:$0xff] %v1077
        %1110 = vst [vmem:[%s204 + $0xe8] sm:$0xff] %v1078
        %1111 = vst [vmem:[%s204 + $0xf0] sm:$0xff] %v1079
        %1112 = vst [vmem:[%s204 + $0xf8] sm:$0xff] %v1080
        %s1113 = sand.u32 %s97, 1
        %s1114 = scalar_lea.sflag [#allocation4], %s1113
        %s1115 = sand.u32 %s97, 1
        %s1116 = smul.addr %s1115, 256
        %s1117 = scalar_lea.vmem [#allocation7], %s1116
        // Predicated region
        $region41: #{tpu_custom_call.1} parent=31 // pred_check
          %p1118 = pneg %p107
        $region42: #{tpu_custom_call.1} parent=31 // pred_check_branch
          %1120 = sbr.rel (%p1118) target = $region44
        $region43: #{tpu_custom_call.1} parent=31 // pred_region
          %s1121 = smul.u32 32, %s21
          %s1123 = ssub.s32 4096, 4096
          %1124 = vsyncadd %s1114, %s1123
          %s1125 = smul.addr %s1121, 128
          %s1126 = scalar_lea.hbm %s3, %s1125
          %s1127 = sshll.u32 %s1117, 4
          %s1128 = int_to_ptr.vmem [resolvable:$true] %s1127
          %1133 = dma.vmem_to_hbm [thread:$0]  %s1128, 4096, %s1126, %s1114, 128, 128, 8
        $region44: #{tpu_custom_call.1} parent=31 // pred_fallthru
          _
      $region32: #{tpu_custom_call.1} parent=5 // pred_fallthru
        _
      %p1134 = scmp.le.s32.totalorder 2, %s16
      // Predicated region
      $region45: #{tpu_custom_call.1} parent=5 // pred_check
        %p1135 = pneg %p1134
      $region46: #{tpu_custom_call.1} parent=5 // pred_check_branch
        %1137 = sbr.rel (%p1135) target = $region48
      $region47: #{tpu_custom_call.1} parent=5 // pred_region
        %s1138 = ssub.s32 %s16, 2
        // Predicated region
        $region49: #{tpu_custom_call.1} parent=47 // pred_check
          %p1139 = pneg %p113
        $region50: #{tpu_custom_call.1} parent=47 // pred_check_branch
          %1141 = sbr.rel (%p1139) target = $region52
        $region51: #{tpu_custom_call.1} parent=47 // pred_region
          %s1142 = sand.u32 %s98, 1
          %s1143 = scalar_lea.sflag [#allocation4], %s1142
          %s1144 = sand.u32 %s98, 1
          %s1145 = smul.addr %s1144, 256
          %s1146 = scalar_lea.vmem [#allocation7], %s1145
          %1147 = dma.done %s1143, 4096
        $region52: #{tpu_custom_call.1} parent=47 // pred_fallthru
          _
      $region48: #{tpu_custom_call.1} parent=5 // pred_fallthru
        _
    $region6: #{tpu_custom_call.1} parent=1 // loop_footer
      %s20 = sadd.s32 1, %s16
    $region7: #{tpu_custom_call.1} parent=1 // loop_footer_branch
      %15 = sbr.rel target = $region3
    $region8: #{tpu_custom_call.1} parent=1 // loop_exit
      _
    %1148 = vsyncpa [#allocation3], 1
    %s1149 = scalar_lea.sflag [#allocation3], 1
    %1150 = vsyncpa %s1149, 1
    %1151 = vsyncpa [#allocation6], 1
    %1152 = vsyncpa [#allocation4], 1
    %s1153 = scalar_lea.sflag [#allocation4], 1
    %1154 = vsyncpa %s1153, 1

</llo_original>
